<compile_context>
chip_gen: v7x
topology: tpu7x:2x2x1
jax: 0.10.0
libtpu: 0.0.40
codegen_flags: <defaults>
</compile_context>

<pallas_src>
import jax
import jax.numpy as jnp
from jax.experimental import pallas as pl
from jax.experimental.pallas import tpu as pltpu


# ----------------------------------------------------------------------------
# Wrapper-side weight preprocessing: 7x7 conv (2->1 ch, padding=3) as a matrix.
# conv_flat (1, HW) = maps_flat (1, 2*HW) @ M (2*HW, HW)
# ----------------------------------------------------------------------------
def _build_spatial_conv_matrix(wconv, H, W, dtype):
    w = wconv[0].astype(jnp.float32)                  # (2, 7, 7)
    iy = jnp.arange(H)[:, None, None, None]
    ix = jnp.arange(W)[None, :, None, None]
    oy = jnp.arange(H)[None, None, :, None]
    ox = jnp.arange(W)[None, None, None, :]
    ky = iy - oy + 3                                  # kernel row index
    kx = ix - ox + 3                                  # kernel col index
    valid = (ky >= 0) & (ky < 7) & (kx >= 0) & (kx < 7)
    kyc = jnp.clip(ky, 0, 6)
    kxc = jnp.clip(kx, 0, 6)
    M = jnp.where(valid[None], w[:, kyc, kxc], 0.0)   # (2, H, W, H, W)
    return M.reshape(2 * H * W, H * W).astype(dtype)


# ----------------------------------------------------------------------------
# Fused CBAM kernel.  Per grid step: one batch element, block (1, C, HW).
# ----------------------------------------------------------------------------
def cbam_kernel(b_ref, x_ref, w1_ref, w2_ref, m_ref, o_ref):
    x = x_ref[0]                                      # (C, HW) lane-dense
    w1 = w1_ref[...]                                  # (Cr, C)  conv1 weight
    w2 = w2_ref[...]                                  # (C, Cr)  conv2 weight

    # ---- channel attention: global avg/max pool + shared MLP + sigmoid ----
    avg = jnp.mean(x, axis=1, keepdims=True)          # (C, 1)
    mx = jnp.max(x, axis=1, keepdims=True)            # (C, 1)
    pooled = jnp.concatenate([avg, mx], axis=1)       # (C, 2)  [avg | max]

    h = jnp.maximum(
        jnp.dot(w1, pooled, preferred_element_type=jnp.float32), 0.0)   # (Cr, 2)
    o2 = jnp.dot(w2, h, preferred_element_type=jnp.float32)             # (C, 2)
    c_att = jax.nn.sigmoid(o2[:, 0:1] + o2[:, 1:2])   # (C, 1)

    out = x * c_att                                   # (C, HW)  stays in VMEM

    # ---- spatial attention: channel mean/max -> 7x7 conv -> sigmoid ----
    m_mean = jnp.mean(out, axis=0, keepdims=True)     # (1, HW)
    m_max = jnp.max(out, axis=0, keepdims=True)       # (1, HW)
    maps = jnp.concatenate([m_mean, m_max], axis=1)   # (1, 2*HW)

    conv = jnp.dot(maps, m_ref[...],
                   preferred_element_type=jnp.float32)                  # (1, HW)
    s_att = jax.nn.sigmoid(conv + b_ref[0])           # (1, HW)

    o_ref[0] = (out * s_att).astype(o_ref.dtype)


# ----------------------------------------------------------------------------
# Wrapper
# ----------------------------------------------------------------------------
def cbam_pallas(x, w1, w2, wconv, bconv):
    """x: (N, C, H, W) float32.
    w1: (Cr, C)       -- shared_MLP conv1 weight (1x1, no bias)
    w2: (C, Cr)       -- shared_MLP conv2 weight (1x1, no bias)
    wconv: (1, 2, 7, 7), bconv: (1,)  -- spatial 7x7 conv weight / bias.
    """
    N, C, H, W = x.shape
    HW = H * W
    Cr = w1.shape[0]

    x3 = x.reshape(N, C, HW)                          # lane-dense layout
    m_cat = _build_spatial_conv_matrix(wconv, H, W, x.dtype)   # (2*HW, HW)

    out3 = pl.pallas_call(
        cbam_kernel,
        out_shape=jax.ShapeDtypeStruct((N, C, HW), x.dtype),
        grid=(N,),
        in_specs=[
            pl.BlockSpec(memory_space=pltpu.MemorySpace.SMEM),          # bconv
            pl.BlockSpec((1, C, HW), lambda n: (n, 0, 0)),              # x
            pl.BlockSpec((Cr, C), lambda n: (0, 0)),                    # w1
            pl.BlockSpec((C, Cr), lambda n: (0, 0)),                    # w2
            pl.BlockSpec((2 * HW, HW), lambda n: (0, 0)),               # conv mat
        ],
        out_specs=pl.BlockSpec((1, C, HW), lambda n: (n, 0, 0)),
        compiler_params=pltpu.CompilerParams(
            dimension_semantics=("parallel",)),
    )(bconv, x3, w1, w2, m_cat)

    return out3.reshape(N, C, H, W)


# ----------------------------------------------------------------------------
# Pure-JAX reference (mirrors the PyTorch forward exactly)
# ----------------------------------------------------------------------------
def cbam_ref(x, w1, w2, wconv, bconv):
    avg = jnp.mean(x, axis=(2, 3))                    # (N, C)
    mx = jnp.max(x, axis=(2, 3))                      # (N, C)

    def mlp(v):                                       # (N, C)
        h = jnp.maximum(v @ w1.T, 0.0)                # (N, Cr)
        return h @ w2.T                               # (N, C)

    catt = jax.nn.sigmoid(mlp(avg) + mlp(mx))[:, :, None, None]
    out1 = catt * x

    avg_s = jnp.mean(out1, axis=1, keepdims=True)
    max_s = jnp.max(out1, axis=1, keepdims=True)
    cat = jnp.concatenate([avg_s, max_s], axis=1)     # (N, 2, H, W)
    conv = jax.lax.conv_general_dilated(
        cat, wconv, window_strides=(1, 1), padding=((3, 3), (3, 3)),
        dimension_numbers=("NCHW", "OIHW", "NCHW"))
    satt = jax.nn.sigmoid(conv + bconv.reshape(1, 1, 1, 1))
    return satt * out1


if __name__ == "__main__":
    N, C, H, W = 2, 32, 16, 16                        # channel must be >= ratio (16)
    ratio = 16
    Cr = C // ratio

    key = jax.random.PRNGKey(0)
    k1, k2, k3, k4, k5 = jax.random.split(key, 5)
    x = jax.random.normal(k5, (N, C, H, W), dtype=jnp.float32)
    w1 = 0.1 * jax.random.normal(k1, (Cr, C), dtype=jnp.float32)   # conv1 (1x1)
    w2 = 0.1 * jax.random.normal(k2, (C, Cr), dtype=jnp.float32)   # conv2 (1x1)
    wconv = 0.1 * jax.random.normal(k3, (1, 2, 7, 7), dtype=jnp.float32)
    bconv = 0.1 * jax.random.normal(k4, (1,), dtype=jnp.float32)

    out = jax.block_until_ready(cbam_pallas(x, w1, w2, wconv, bconv))

    ref = jax.block_until_ready(cbam_ref(x, w1, w2, wconv, bconv))
    assert out.shape == (N, C, H, W)
    assert jnp.allclose(out, ref, atol=1e-5, rtol=1e-5), "mismatch vs reference"

    print("KERNEL_OK")
</pallas_src>

<mosaic_0001>
module attributes {stable_mosaic.version = 11 : i64} {
  func.func @cbam_kernel(%arg0: i32, %arg1: memref<1xf32, #tpu.memory_space<smem>>, %arg2: memref<1x32x256xf32, #tpu.memory_space<vmem>>, %arg3: memref<2x32xf32, #tpu.memory_space<vmem>>, %arg4: memref<32x2xf32, #tpu.memory_space<vmem>>, %arg5: memref<512x256xf32, #tpu.memory_space<vmem>>, %arg6: memref<1x32x256xf32, #tpu.memory_space<vmem>>) attributes {dimension_semantics = [#tpu.dimension_semantics<parallel>], iteration_bounds = array<i64: 2>, scalar_prefetch = 0 : i64, scratch_operands = 0 : i64, tpu.core_type = #tpu.core_type<tc>, window_params = [{transform_indices = @transform_0, window_bounds = array<i64: 1>}, {transform_indices = @transform_1, window_bounds = array<i64: 1, 32, 256>}, {pipeline_mode = #tpu.pipeline_mode<synchronous>, transform_indices = @transform_2, window_bounds = array<i64: 2, 32>}, {pipeline_mode = #tpu.pipeline_mode<synchronous>, transform_indices = @transform_3, window_bounds = array<i64: 32, 2>}, {pipeline_mode = #tpu.pipeline_mode<synchronous>, transform_indices = @transform_4, window_bounds = array<i64: 512, 256>}, {transform_indices = @transform_5, window_bounds = array<i64: 1, 32, 256>}]} {
    %c0 = arith.constant 0 : index
    %c0_0 = arith.constant 0 : index
    %c0_1 = arith.constant 0 : index
    %0 = vector.load %arg2[%c0, %c0_0, %c0_1] : memref<1x32x256xf32, #tpu.memory_space<vmem>>, vector<1x32x256xf32>
    %1 = vector.shape_cast %0 : vector<1x32x256xf32> to vector<32x256xf32>
    %c0_2 = arith.constant 0 : index
    %c0_3 = arith.constant 0 : index
    %2 = vector.load %arg3[%c0_2, %c0_3] : memref<2x32xf32, #tpu.memory_space<vmem>>, vector<2x32xf32>
    %c0_4 = arith.constant 0 : index
    %c0_5 = arith.constant 0 : index
    %3 = vector.load %arg4[%c0_4, %c0_5] : memref<32x2xf32, #tpu.memory_space<vmem>>, vector<32x2xf32>
    %cst = arith.constant dense<0.000000e+00> : vector<32xf32>
    %4 = vector.multi_reduction <add>, %1, %cst [1] : vector<32x256xf32> to vector<32xf32>
    %5 = vector.shape_cast %4 : vector<32xf32> to vector<32x1xf32>
    %cst_6 = arith.constant 2.560000e+02 : f32
    %6 = vector.broadcast %cst_6 : f32 to vector<32x1xf32>
    %7 = arith.divf %5, %6 : vector<32x1xf32>
    %cst_7 = arith.constant dense<0xFF800000> : vector<32xf32>
    %8 = vector.multi_reduction <maximumf>, %1, %cst_7 [1] : vector<32x256xf32> to vector<32xf32>
    %9 = vector.shape_cast %8 : vector<32xf32> to vector<32x1xf32>
    %10 = tpu.concatenate %7, %9 in 1 : vector<32x1xf32>, vector<32x1xf32> -> vector<32x2xf32>
    %cst_8 = arith.constant dense<0.000000e+00> : vector<2x2xf32>
    %11 = tpu.matmul %2, %10, %cst_8 {dimension_numbers = #tpu.dot_dimension_numbers<[1], [0], [0], [1], [0, 0, 1, 1], [], []>} : vector<2x32xf32>, vector<32x2xf32>, vector<2x2xf32> -> vector<2x2xf32>
    %cst_9 = arith.constant 0.000000e+00 : f32
    %12 = vector.broadcast %cst_9 : f32 to vector<2x2xf32>
    %13 = arith.maximumf %11, %12 : vector<2x2xf32>
    %cst_10 = arith.constant dense<0.000000e+00> : vector<32x2xf32>
    %14 = tpu.matmul %3, %13, %cst_10 {dimension_numbers = #tpu.dot_dimension_numbers<[1], [0], [0], [1], [0, 0, 1, 1], [], []>} : vector<32x2xf32>, vector<2x2xf32>, vector<32x2xf32> -> vector<32x2xf32>
    %15 = vector.extract_strided_slice %14 {offsets = [0, 0], sizes = [32, 1], strides = [1, 1]} : vector<32x2xf32> to vector<32x1xf32>
    %16 = vector.extract_strided_slice %14 {offsets = [0, 1], sizes = [32, 1], strides = [1, 1]} : vector<32x2xf32> to vector<32x1xf32>
    %17 = arith.addf %15, %16 : vector<32x1xf32>
    %18 = arith.negf %17 : vector<32x1xf32>
    %19 = math.exp %18 : vector<32x1xf32>
    %cst_11 = arith.constant 1.000000e+00 : f32
    %20 = vector.broadcast %cst_11 : f32 to vector<32x1xf32>
    %21 = arith.addf %20, %19 : vector<32x1xf32>
    %22 = arith.divf %20, %21 : vector<32x1xf32>
    %23 = vector.broadcast %22 : vector<32x1xf32> to vector<32x256xf32>
    %24 = arith.mulf %1, %23 : vector<32x256xf32>
    %cst_12 = arith.constant dense<0.000000e+00> : vector<256xf32>
    %25 = vector.multi_reduction <add>, %24, %cst_12 [0] : vector<32x256xf32> to vector<256xf32>
    %26 = vector.shape_cast %25 : vector<256xf32> to vector<1x256xf32>
    %cst_13 = arith.constant 3.200000e+01 : f32
    %27 = vector.broadcast %cst_13 : f32 to vector<1x256xf32>
    %28 = arith.divf %26, %27 : vector<1x256xf32>
    %cst_14 = arith.constant dense<0xFF800000> : vector<256xf32>
    %29 = vector.multi_reduction <maximumf>, %24, %cst_14 [0] : vector<32x256xf32> to vector<256xf32>
    %30 = vector.shape_cast %29 : vector<256xf32> to vector<1x256xf32>
    %31 = tpu.concatenate %28, %30 in 1 : vector<1x256xf32>, vector<1x256xf32> -> vector<1x512xf32>
    %c0_15 = arith.constant 0 : index
    %c0_16 = arith.constant 0 : index
    %32 = vector.load %arg5[%c0_15, %c0_16] : memref<512x256xf32, #tpu.memory_space<vmem>>, vector<512x256xf32>
    %cst_17 = arith.constant dense<0.000000e+00> : vector<1x256xf32>
    %33 = tpu.matmul %31, %32, %cst_17 {dimension_numbers = #tpu.dot_dimension_numbers<[1], [0], [0], [1], [0, 0, 1, 1], [], []>} : vector<1x512xf32>, vector<512x256xf32>, vector<1x256xf32> -> vector<1x256xf32>
    %c0_18 = arith.constant 0 : index
    %34 = memref.load %arg1[%c0_18] : memref<1xf32, #tpu.memory_space<smem>>
    %35 = vector.broadcast %34 : f32 to vector<1x256xf32>
    %36 = arith.addf %33, %35 : vector<1x256xf32>
    %37 = arith.negf %36 : vector<1x256xf32>
    %38 = math.exp %37 : vector<1x256xf32>
    %cst_19 = arith.constant 1.000000e+00 : f32
    %39 = vector.broadcast %cst_19 : f32 to vector<1x256xf32>
    %40 = arith.addf %39, %38 : vector<1x256xf32>
    %41 = arith.divf %39, %40 : vector<1x256xf32>
    %42 = vector.broadcast %41 : vector<1x256xf32> to vector<32x256xf32>
    %43 = arith.mulf %24, %42 : vector<32x256xf32>
    %c0_20 = arith.constant 0 : index
    %c0_21 = arith.constant 0 : index
    %c0_22 = arith.constant 0 : index
    %44 = vector.load %arg6[%c0_20, %c0_21, %c0_22] : memref<1x32x256xf32, #tpu.memory_space<vmem>>, vector<1x32x256xf32>
    %45 = vector.shape_cast %44 : vector<1x32x256xf32> to vector<32x256xf32>
    %46 = vector.shape_cast %43 : vector<32x256xf32> to vector<1x32x256xf32>
    tpu.vector_store %arg6[%c0_20, %c0_21, %c0_22], %46 {strides = array<i32>} : memref<1x32x256xf32, #tpu.memory_space<vmem>>, vector<1x32x256xf32>,
    return
  }
  func.func @transform_0(%arg0: i32) -> i32 {
    %c0_i32 = arith.constant 0 : i32
    %c0_i32_0 = arith.constant 0 : i32
    return %c0_i32 : i32
  }
  func.func @transform_1(%arg0: i32) -> (i32, i32, i32) {
    %c0_i32 = arith.constant 0 : i32
    %c0_i32_0 = arith.constant 0 : i32
    %c0_i32_1 = arith.constant 0 : i32
    return %arg0, %c0_i32, %c0_i32_0 : i32, i32, i32
  }
  func.func @transform_2(%arg0: i32) -> (i32, i32) {
    %c0_i32 = arith.constant 0 : i32
    %c0_i32_0 = arith.constant 0 : i32
    %c0_i32_1 = arith.constant 0 : i32
    return %c0_i32, %c0_i32_0 : i32, i32
  }
  func.func @transform_3(%arg0: i32) -> (i32, i32) {
    %c0_i32 = arith.constant 0 : i32
    %c0_i32_0 = arith.constant 0 : i32
    %c0_i32_1 = arith.constant 0 : i32
    return %c0_i32, %c0_i32_0 : i32, i32
  }
  func.func @transform_4(%arg0: i32) -> (i32, i32) {
    %c0_i32 = arith.constant 0 : i32
    %c0_i32_0 = arith.constant 0 : i32
    %c0_i32_1 = arith.constant 0 : i32
    return %c0_i32, %c0_i32_0 : i32, i32
  }
  func.func @transform_5(%arg0: i32) -> (i32, i32, i32) {
    %c0_i32 = arith.constant 0 : i32
    %c0_i32_0 = arith.constant 0 : i32
    %c0_i32_1 = arith.constant 0 : i32
    return %arg0, %c0_i32, %c0_i32_0 : i32, i32, i32
  }
}

</mosaic_0001>

<llo_original>
// kernel: tpu_custom_call.1
$region0: #{tpu_custom_call.1}
  #allocation0 [shape = 'u32[]', space=smem, size = 0x4, offset = 0x4, fixed_abs, tag = 'smem constant byte address 0x4 - core index']
  #allocation1 [shape = 'u32[144,128]{1,0:T(1,128)}', space=vmem, size = 0x12000, scoped, tag = 'internal scratch']
  #allocation2 [shape = 'f32[1]{0:T(128)S(6)}', space=smem, size = 0x200, scoped, tag = 'scoped memory for tpu_custom_call.1']
  %s0 = inlined_call_operand.<no memory space> [shape: f32[1], index: 0, kind: input, shape index: {}]
  %s1 = inlined_call_operand.hbm [shape: f32[2,32,256], index: 1, kind: input, shape index: {}]
  %s2 = inlined_call_operand.vmem [shape: f32[2,32], index: 2, kind: input, shape index: {}]
  %s3 = inlined_call_operand.vmem [shape: f32[32,2], index: 3, kind: input, shape index: {}]
  %s4 = inlined_call_operand.hbm [shape: f32[512,256], index: 4, kind: input, shape index: {}]
  %s5 = inlined_call_operand.hbm [shape: f32[2,32,256], index: 5, kind: output, shape index: {}]
  %s6 = sld [smem:[#allocation0]]
  $region61: #{tpu_custom_call.1} parent=0
    _
  %s8 = ssub.s32 1, %s6
  %s9 = scalar_select 0, %s8, %s6
  %10 = sst [smem:[#allocation2]] %s0
  $region1: #{tpu_custom_call.1} parent=0
    #allocation3 [shape = 'u8[65536]{0}', space=vmem, size = 0x10000, scoped, tag = 'input window, operand 1']
    #allocation4 [shape = 's32[2]{0}', space=sflag, size = 0x8, scoped, tag = 'scoped memory for tpu_custom_call.1']
    #allocation5 [shape = 's32[2]{0}', space=sflag, size = 0x8, scoped, tag = 'scoped memory for tpu_custom_call.1']
    #allocation6 [shape = 'u8[524288]{0}', space=vmem, size = 0x80000, scoped, tag = 'input window, operand 4, single buffered']
    #allocation7 [shape = 's32[1]{0}', space=sflag, size = 0x4, scoped, tag = 'scoped memory for tpu_custom_call.1']
    #allocation8 [shape = 'u8[65536]{0}', space=vmem, size = 0x10000, scoped, tag = 'output window, operand 0']
    %11 = vsyncpa [#allocation4], 0
    %s12 = scalar_lea.sflag [#allocation4], 1
    %13 = vsyncpa %s12, 0
    %14 = vsyncpa [#allocation7], 0
    %15 = vsyncpa [#allocation5], 0
    %s16 = scalar_lea.sflag [#allocation5], 1
    %17 = vsyncpa %s16, 0
    loop: start=0, step=1, limit=4
    $region2: #{tpu_custom_call.1} parent=1 // loop_pre_header
      _
    $region3: #{tpu_custom_call.1} parent=1 // loop_header
      %s19 = sphi 0, %s23
      %p20 = scmp.ge.s32.totalorder %s19, 4
      %s27 = sphi 0, %s27
      %s29 = sphi 0, %s27
      %s30 = sphi 0, %s29
      %s44 = sphi 0, %s30
      %s50 = sphi 0, %s52
      %s53 = sphi 0, %s50
      %s54 = sphi 0, %s53
      %s70 = sphi 0, %s54
      %s74 = sphi 0, %s74
      %s76 = sphi 0, %s74
      %s77 = sphi 0, %s76
      %s91 = sphi 0, %s77
      %s95 = sphi 0, %s95
      %s97 = sphi 0, %s95
      %s98 = sphi 0, %s97
      %s112 = sphi 0, %s98
      %s116 = sphi 0, %s116
      %s118 = sphi 0, %s116
      %s119 = sphi 0, %s118
      %s133 = sphi 0, %s119
      %s139 = sphi 0, %s141
      %s142 = sphi 0, %s139
      %s143 = sphi 0, %s142
      %s159 = sphi 0, %s143
    $region4: #{tpu_custom_call.1} parent=1 // loop_header_branch
      %22 = sbr.rel (%p20) target = $region8
    $region5: #{tpu_custom_call.1} parent=1 // loop_body
      %s24 = ssub.s32 %s19, 1
      %s25 = ssub.s32 %s19, 2
      %s26 = sadd.s32 %s19, 1
      %s28 = sadd.s32 %s27, 1
      %p31 = scmp.eq.s32.totalorder %s19, 1
      %p32 = scmp.ne.s32.totalorder %s27, %s29
      %p33 = scmp.eq.s32.totalorder %s19, 0
      %p34 = por %p32, %p33
      %p35 = scmp.ne.s32.totalorder %s27, %s29
      %p36 = scmp.eq.s32.totalorder %s24, 1
      %p37 = por %p35, %p36
      %p38 = scmp.ne.s32.totalorder %s29, %s30
      %p39 = scmp.eq.s32.totalorder %s24, 0
      %p40 = por %p38, %p39
      %p41 = scmp.ne.s32.totalorder %s29, %s30
      %p42 = scmp.eq.s32.totalorder %s25, 1
      %p43 = por %p41, %p42
      %p45 = scmp.ne.s32.totalorder %s30, %s44
      %p46 = scmp.eq.s32.totalorder %s25, 0
      %p47 = por %p45, %p46
      %s48 = ssub.s32 %s19, %s26
      %p49 = scmp.eq.s32.totalorder %s48, 0
      %s51 = sadd.s32 %s50, 1
      %s52 = scalar_select %p49, %s50, %s51
      %p55 = pneg %p49
      %p56 = scmp.eq.s32.totalorder %s19, 1
      %p57 = por %p55, %p56
      %p58 = scmp.ne.s32.totalorder %s50, %s53
      %p59 = scmp.eq.s32.totalorder %s19, 0
      %p60 = por %p58, %p59
      %p61 = scmp.ne.s32.totalorder %s50, %s53
      %p62 = scmp.eq.s32.totalorder %s24, 1
      %p63 = por %p61, %p62
      %p64 = scmp.ne.s32.totalorder %s53, %s54
      %p65 = scmp.eq.s32.totalorder %s24, 0
      %p66 = por %p64, %p65
      %p67 = scmp.ne.s32.totalorder %s53, %s54
      %p68 = scmp.eq.s32.totalorder %s25, 1
      %p69 = por %p67, %p68
      %p71 = scmp.ne.s32.totalorder %s54, %s70
      %p72 = scmp.eq.s32.totalorder %s25, 0
      %p73 = por %p71, %p72
      %s75 = sadd.s32 %s74, 1
      %p78 = scmp.eq.s32.totalorder %s19, 1
      %p79 = scmp.ne.s32.totalorder %s74, %s76
      %p80 = scmp.eq.s32.totalorder %s19, 0
      %p81 = por %p79, %p80
      %p82 = scmp.ne.s32.totalorder %s74, %s76
      %p83 = scmp.eq.s32.totalorder %s24, 1
      %p84 = por %p82, %p83
      %p85 = scmp.ne.s32.totalorder %s76, %s77
      %p86 = scmp.eq.s32.totalorder %s24, 0
      %p87 = por %p85, %p86
      %p88 = scmp.ne.s32.totalorder %s76, %s77
      %p89 = scmp.eq.s32.totalorder %s25, 1
      %p90 = por %p88, %p89
      %p92 = scmp.ne.s32.totalorder %s77, %s91
      %p93 = scmp.eq.s32.totalorder %s25, 0
      %p94 = por %p92, %p93
      %s96 = sadd.s32 %s95, 1
      %p99 = scmp.eq.s32.totalorder %s19, 1
      %p100 = scmp.ne.s32.totalorder %s95, %s97
      %p101 = scmp.eq.s32.totalorder %s19, 0
      %p102 = por %p100, %p101
      %p103 = scmp.ne.s32.totalorder %s95, %s97
      %p104 = scmp.eq.s32.totalorder %s24, 1
      %p105 = por %p103, %p104
      %p106 = scmp.ne.s32.totalorder %s97, %s98
      %p107 = scmp.eq.s32.totalorder %s24, 0
      %p108 = por %p106, %p107
      %p109 = scmp.ne.s32.totalorder %s97, %s98
      %p110 = scmp.eq.s32.totalorder %s25, 1
      %p111 = por %p109, %p110
      %p113 = scmp.ne.s32.totalorder %s98, %s112
      %p114 = scmp.eq.s32.totalorder %s25, 0
      %p115 = por %p113, %p114
      %s117 = sadd.s32 %s116, 1
      %p120 = scmp.eq.s32.totalorder %s19, 1
      %p121 = scmp.ne.s32.totalorder %s116, %s118
      %p122 = scmp.eq.s32.totalorder %s19, 0
      %p123 = por %p121, %p122
      %p124 = scmp.ne.s32.totalorder %s116, %s118
      %p125 = scmp.eq.s32.totalorder %s24, 1
      %p126 = por %p124, %p125
      %p127 = scmp.ne.s32.totalorder %s118, %s119
      %p128 = scmp.eq.s32.totalorder %s24, 0
      %p129 = por %p127, %p128
      %p130 = scmp.ne.s32.totalorder %s118, %s119
      %p131 = scmp.eq.s32.totalorder %s25, 1
      %p132 = por %p130, %p131
      %p134 = scmp.ne.s32.totalorder %s119, %s133
      %p135 = scmp.eq.s32.totalorder %s25, 0
      %p136 = por %p134, %p135
      %s137 = ssub.s32 %s19, %s26
      %p138 = scmp.eq.s32.totalorder %s137, 0
      %s140 = sadd.s32 %s139, 1
      %s141 = scalar_select %p138, %s139, %s140
      %p144 = pneg %p138
      %p145 = scmp.eq.s32.totalorder %s19, 1
      %p146 = por %p144, %p145
      %p147 = scmp.ne.s32.totalorder %s139, %s142
      %p148 = scmp.eq.s32.totalorder %s19, 0
      %p149 = por %p147, %p148
      %p150 = scmp.ne.s32.totalorder %s139, %s142
      %p151 = scmp.eq.s32.totalorder %s24, 1
      %p152 = por %p150, %p151
      %p153 = scmp.ne.s32.totalorder %s142, %s143
      %p154 = scmp.eq.s32.totalorder %s24, 0
      %p155 = por %p153, %p154
      %p156 = scmp.ne.s32.totalorder %s142, %s143
      %p157 = scmp.eq.s32.totalorder %s25, 1
      %p158 = por %p156, %p157
      %p160 = scmp.ne.s32.totalorder %s143, %s159
      %p161 = scmp.eq.s32.totalorder %s25, 0
      %p162 = por %p160, %p161
      %p163 = scmp.le.s32.totalorder 1, %s19
      %p164 = scmp.lt.s32.totalorder %s19, 3
      %p165 = pnand %p163, %p164
      %p166 = pneg %p165
      // Predicated region
      $region9: #{tpu_custom_call.1} parent=5 // pred_check
        _
      $region10: #{tpu_custom_call.1} parent=5 // pred_check_branch
        %168 = sbr.rel (%p165) target = $region12
      $region11: #{tpu_custom_call.1} parent=5 // pred_region
        %s169 = ssub.s32 %s19, 1
        // Predicated region
        $region13: #{tpu_custom_call.1} parent=11 // pred_check
          %p170 = pneg %p40
        $region14: #{tpu_custom_call.1} parent=11 // pred_check_branch
          %172 = sbr.rel (%p170) target = $region16
        $region15: #{tpu_custom_call.1} parent=11 // pred_region
          _
        $region16: #{tpu_custom_call.1} parent=11 // pred_fallthru
          _
        // Predicated region
        $region17: #{tpu_custom_call.1} parent=11 // pred_check
          %p173 = pneg %p87
        $region18: #{tpu_custom_call.1} parent=11 // pred_check_branch
          %175 = sbr.rel (%p173) target = $region20
        $region19: #{tpu_custom_call.1} parent=11 // pred_region
          _
        $region20: #{tpu_custom_call.1} parent=11 // pred_fallthru
          _
        // Predicated region
        $region21: #{tpu_custom_call.1} parent=11 // pred_check
          %p176 = pneg %p108
        $region22: #{tpu_custom_call.1} parent=11 // pred_check_branch
          %178 = sbr.rel (%p176) target = $region24
        $region23: #{tpu_custom_call.1} parent=11 // pred_region
          _
        $region24: #{tpu_custom_call.1} parent=11 // pred_fallthru
          _
        // Predicated region
        $region25: #{tpu_custom_call.1} parent=11 // pred_check
          %p179 = pneg %p129
        $region26: #{tpu_custom_call.1} parent=11 // pred_check_branch
          %181 = sbr.rel (%p179) target = $region28
        $region27: #{tpu_custom_call.1} parent=11 // pred_region
          %s183 = ssub.s32 16384, 16384
          %184 = vsyncadd [#allocation7], %s183
          %s185 = sshll.u32 [#allocation6], 4
          %s186 = int_to_ptr.vmem [resolvable:$true] %s185
          %191 = dma.hbm_to_vmem [thread:$0]  %s4, 16384, %s186, [#allocation7], 256, 256, 16
        $region28: #{tpu_custom_call.1} parent=11 // pred_fallthru
          _
      $region12: #{tpu_custom_call.1} parent=5 // pred_fallthru
        _
      %p192 = scmp.lt.s32.totalorder %s19, 2
      // Predicated region
      $region29: #{tpu_custom_call.1} parent=5 // pred_check
        %p193 = pneg %p192
      $region30: #{tpu_custom_call.1} parent=5 // pred_check_branch
        %195 = sbr.rel (%p193) target = $region32
      $region31: #{tpu_custom_call.1} parent=5 // pred_region
        // Predicated region
        $region33: #{tpu_custom_call.1} parent=31 // pred_check
          %p196 = pneg %p60
        $region34: #{tpu_custom_call.1} parent=31 // pred_check_branch
          %198 = sbr.rel (%p196) target = $region36
        $region35: #{tpu_custom_call.1} parent=31 // pred_region
          %s199 = sand.u32 %s50, 1
          %s200 = scalar_lea.sflag [#allocation4], %s199
          %s201 = sand.u32 %s50, 1
          %s202 = smul.addr %s201, 64
          %s203 = scalar_lea.vmem [#allocation3], %s202
          %s205 = ssub.s32 1024, 1024
          %206 = vsyncadd %s200, %s205
          %s207 = smul.addr %s19, 8
          %s208 = smul.addr %s207, 128
          %s209 = scalar_lea.hbm %s1, %s208
          %s210 = sshll.u32 %s203, 4
          %s211 = int_to_ptr.vmem [resolvable:$true] %s210
          %216 = dma.hbm_to_vmem [thread:$0]  %s209, 1024, %s211, %s200, 256, 256, 16
        $region36: #{tpu_custom_call.1} parent=31 // pred_fallthru
          _
      $region32: #{tpu_custom_call.1} parent=5 // pred_fallthru
        _
      %p217 = scmp.le.s32.totalorder 1, %s19
      %p218 = scmp.lt.s32.totalorder %s19, 3
      %p219 = pnand %p217, %p218
      %p220 = pneg %p219
      // Predicated region
      $region37: #{tpu_custom_call.1} parent=5 // pred_check
        _
      $region38: #{tpu_custom_call.1} parent=5 // pred_check_branch
        %222 = sbr.rel (%p219) target = $region40
      $region39: #{tpu_custom_call.1} parent=5 // pred_region
        %s223 = ssub.s32 %s19, 1
        %s224 = sand.u32 %s53, 1
        %s225 = scalar_lea.sflag [#allocation4], %s224
        %s226 = sand.u32 %s53, 1
        %s227 = smul.addr %s226, 64
        %s228 = scalar_lea.vmem [#allocation3], %s227
        // Predicated region
        $region41: #{tpu_custom_call.1} parent=39 // pred_check
          %p229 = pneg %p66
        $region42: #{tpu_custom_call.1} parent=39 // pred_check_branch
          %231 = sbr.rel (%p229) target = $region44
        $region43: #{tpu_custom_call.1} parent=39 // pred_region
          %232 = dma.done %s225, 1024
        $region44: #{tpu_custom_call.1} parent=39 // pred_fallthru
          _
        // Predicated region
        $region45: #{tpu_custom_call.1} parent=39 // pred_check
          %p233 = pneg %p129
        $region46: #{tpu_custom_call.1} parent=39 // pred_check_branch
          %235 = sbr.rel (%p233) target = $region48
        $region47: #{tpu_custom_call.1} parent=39 // pred_region
          %236 = dma.done [#allocation7], 16384
        $region48: #{tpu_custom_call.1} parent=39 // pred_fallthru
          _
        %p237 = pneg %p40
        %p238 = pneg %p37
        %s239 = sand.u32 %s53, 1
        %s240 = scalar_lea.sflag [#allocation4], %s239
        %s241 = sand.u32 %s53, 1
        %s242 = smul.addr %s241, 64
        %s243 = scalar_lea.vmem [#allocation3], %s242
        %p244 = pneg %p66
        %p245 = pneg %p63
        %p246 = pneg %p87
        %p247 = pneg %p84
        %p248 = pneg %p108
        %p249 = pneg %p105
        %p250 = pneg %p129
        %p251 = pneg %p126
        %p252 = pneg %p155
        %p253 = pneg %p152
        %s254 = sand.u32 %s142, 1
        %s255 = scalar_lea.sflag [#allocation5], %s254
        %s256 = sand.u32 %s142, 1
        %s257 = smul.addr %s256, 64
        %s258 = scalar_lea.vmem [#allocation8], %s257
        %v259 = vld [vmem:[%s228] sm:$0xff]
        %v260 = vld [vmem:[%s228 + $0x8] sm:$0xff]
        %v261 = vld [vmem:[%s228 + $0x10] sm:$0xff]
        %v262 = vld [vmem:[%s228 + $0x18] sm:$0xff]
        %v263 = vld [vmem:[%s228 + $0x20] sm:$0xff]
        %v264 = vld [vmem:[%s228 + $0x28] sm:$0xff]
        %v265 = vld [vmem:[%s228 + $0x30] sm:$0xff]
        %v266 = vld [vmem:[%s228 + $0x38] sm:$0xff]
        %v267 = vld [vmem:[%s2] sm:$0x3]
        %v268 = vld [vmem:[%s3] sm:$0xff]
        %v269 = vld [vmem:[%s3 + $0x8] sm:$0xff]
        %v270 = vld [vmem:[%s3 + $0x10] sm:$0xff]
        %v271 = vld [vmem:[%s3 + $0x18] sm:$0xff]
        %v272 = vadd.f32 %v259, %v260
        %273 = vadd.xlane.f32.xlu0 %v272
        %v274 = vpop.xlane.xlu0 %273
        %v275 = vadd.f32 %v261, %v262
        %276 = vadd.xlane.f32.xlu0 %v275
        %v277 = vpop.xlane.xlu0 %276
        %v278 = vadd.f32 %v263, %v264
        %279 = vadd.xlane.f32.xlu0 %v278
        %v280 = vpop.xlane.xlu0 %279
        %v281 = vadd.f32 %v265, %v266
        %282 = vadd.xlane.f32.xlu0 %v281
        %v283 = vpop.xlane.xlu0 %282
        %v284 = vrcp.pop 256.0
        %v285 = vmul.f32 %v274, %v284
        %v286 = vmul.f32 %v277, %v284
        %v287 = vmul.f32 %v280, %v284
        %v288 = vmul.f32 %v283, %v284
        %v289 = vmax.f32 %v259, %v260
        %290 = vmax.xlane.f32.xlu0 %v289
        %v291 = vpop.xlane.xlu0 %290
        %v292 = vmax.f32 %v261, %v262
        %293 = vmax.xlane.f32.xlu0 %v292
        %v294 = vpop.xlane.xlu0 %293
        %v295 = vmax.f32 %v263, %v264
        %296 = vmax.xlane.f32.xlu0 %v295
        %v297 = vpop.xlane.xlu0 %296
        %v298 = vmax.f32 %v265, %v266
        %299 = vmax.xlane.f32.xlu0 %v298
        %v300 = vpop.xlane.xlu0 %299
        %vm301 = vcmask 7168
        %v302 = vsel %vm301, %v285, %v291
        %v303 = vsel %vm301, %v286, %v294
        %v304 = vsel %vm301, %v287, %v297
        %v305 = vsel %vm301, %v288, %v300
        %vm306 = vcmask 261120
        %v308 = vsel %vm306, %v267, 0
        %310 = vmatprep.subr.mxu0 0.0
        %311 = vmatpush1.msra.mxu0 %v302
        %312 = vmatprep.subr.mxu0 0.0
        %313 = vmatpush1.msra.mxu0 %v303
        %314 = vmatprep.subr.mxu0 0.0
        %315 = vmatpush1.msra.mxu0 %v304
        %316 = vmatprep.subr.mxu0 0.0
        %317 = vmatpush1.msra.mxu0 %v305
        %318 = vmatprep.subr.mxu0 0.0
        %319 = vmatpush1.msra.mxu0 0.0
        %320 = vmatprep.subr.mxu0 0.0
        %321 = vmatpush1.msra.mxu0 0.0
        %322 = vmatprep.subr.mxu0 0.0
        %323 = vmatpush1.msra.mxu0 0.0
        %324 = vmatprep.subr.mxu0 0.0
        %325 = vmatpush1.msra.mxu0 0.0
        %326 = vmatprep.subr.mxu0 0.0
        %327 = vmatpush1.msra.mxu0 0.0
        %328 = vmatprep.subr.mxu0 0.0
        %329 = vmatpush1.msra.mxu0 0.0
        %330 = vmatprep.subr.mxu0 0.0
        %331 = vmatpush1.msra.mxu0 0.0
        %332 = vmatprep.subr.mxu0 0.0
        %333 = vmatpush1.msra.mxu0 0.0
        %334 = vmatprep.subr.mxu0 0.0
        %335 = vmatpush1.msra.mxu0 0.0
        %336 = vmatprep.subr.mxu0 0.0
        %337 = vmatpush1.msra.mxu0 0.0
        %338 = vmatprep.subr.mxu0 0.0
        %339 = vmatpush1.msra.mxu0 0.0
        %340 = vmatprep.subr.mxu0 0.0
        %341 = vmatpush1.msra.mxu0 0.0
        %342 = vmatprep.subr.mxu0 0.0
        %343 = vmatpush1.msra.mxu0 0.0
        %344 = vmatprep.subr.mxu0 0.0
        %345 = vmatpush1.msra.mxu0 0.0
        %346 = vmatprep.subr.mxu0 0.0
        %347 = vmatpush1.msra.mxu0 0.0
        %348 = vmatprep.subr.mxu0 0.0
        %349 = vmatpush1.msra.mxu0 0.0
        %350 = vmatprep.subr.mxu0 0.0
        %351 = vmatpush1.msra.mxu0 0.0
        %352 = vmatprep.subr.mxu0 0.0
        %353 = vmatpush1.msra.mxu0 0.0
        %354 = vmatprep.subr.mxu0 0.0
        %355 = vmatpush1.msra.mxu0 0.0
        %356 = vmatprep.subr.mxu0 0.0
        %357 = vmatpush1.msra.mxu0 0.0
        %358 = vmatprep.subr.mxu0 0.0
        %359 = vmatpush1.msra.mxu0 0.0
        %360 = vmatprep.subr.mxu0 0.0
        %361 = vmatpush1.msra.mxu0 0.0
        %362 = vmatprep.subr.mxu0 0.0
        %363 = vmatpush1.msra.mxu0 0.0
        %364 = vmatprep.subr.mxu0 0.0
        %365 = vmatpush1.msra.mxu0 0.0
        %366 = vmatprep.subr.mxu0 0.0
        %367 = vmatpush1.msra.mxu0 0.0
        %368 = vmatprep.subr.mxu0 0.0
        %369 = vmatpush1.msra.mxu0 0.0
        %370 = vmatprep.subr.mxu0 0.0
        %371 = vmatpush1.msra.mxu0 0.0
        %372 = vmatprep.subr.mxu0 0.0
        %373 = vmatpush1.msra.mxu0 0.0
        %374 = vmatprep.mubr.f32.mxu0 0.0
        %375 = vmatmul.mubr.f32.gmra.mrb[0].mxu0 %v308
        %v376 = vpop.f32.mrb[0].mxu0
        %v377 = vadd.f32 0.0, %v376
        %v378 = vpop.f32.mrb[0].mxu0
        %379 = vdwg.mxu0
        %v380 = vmax.f32 %v377, 0.0
        %vm381 = vcmask 15360
        %v383 = vsel %vm381, %v268, 0
        %v386 = vsel %vm381, %v269, 0
        %v389 = vsel %vm381, %v270, 0
        %v392 = vsel %vm381, %v271, 0
        %vm394 = vcmask 1041408
        %v396 = vsel %vm394, %v380, 0
        %398 = vmatprep.subr.mxu0 0.0
        %399 = vmatpush1.msra.mxu0 %v396
        %400 = vmatprep.subr.mxu0 0.0
        %401 = vmatpush1.msra.mxu0 0.0
        %402 = vmatprep.subr.mxu0 0.0
        %403 = vmatpush1.msra.mxu0 0.0
        %404 = vmatprep.subr.mxu0 0.0
        %405 = vmatpush1.msra.mxu0 0.0
        %406 = vmatprep.subr.mxu0 0.0
        %407 = vmatpush1.msra.mxu0 0.0
        %408 = vmatprep.subr.mxu0 0.0
        %409 = vmatpush1.msra.mxu0 0.0
        %410 = vmatprep.subr.mxu0 0.0
        %411 = vmatpush1.msra.mxu0 0.0
        %412 = vmatprep.subr.mxu0 0.0
        %413 = vmatpush1.msra.mxu0 0.0
        %414 = vmatprep.subr.mxu0 0.0
        %415 = vmatpush1.msra.mxu0 0.0
        %416 = vmatprep.subr.mxu0 0.0
        %417 = vmatpush1.msra.mxu0 0.0
        %418 = vmatprep.subr.mxu0 0.0
        %419 = vmatpush1.msra.mxu0 0.0
        %420 = vmatprep.subr.mxu0 0.0
        %421 = vmatpush1.msra.mxu0 0.0
        %422 = vmatprep.subr.mxu0 0.0
        %423 = vmatpush1.msra.mxu0 0.0
        %424 = vmatprep.subr.mxu0 0.0
        %425 = vmatpush1.msra.mxu0 0.0
        %426 = vmatprep.subr.mxu0 0.0
        %427 = vmatpush1.msra.mxu0 0.0
        %428 = vmatprep.subr.mxu0 0.0
        %429 = vmatpush1.msra.mxu0 0.0
        %430 = vmatprep.subr.mxu0 0.0
        %431 = vmatpush1.msra.mxu0 0.0
        %432 = vmatprep.subr.mxu0 0.0
        %433 = vmatpush1.msra.mxu0 0.0
        %434 = vmatprep.subr.mxu0 0.0
        %435 = vmatpush1.msra.mxu0 0.0
        %436 = vmatprep.subr.mxu0 0.0
        %437 = vmatpush1.msra.mxu0 0.0
        %438 = vmatprep.subr.mxu0 0.0
        %439 = vmatpush1.msra.mxu0 0.0
        %440 = vmatprep.subr.mxu0 0.0
        %441 = vmatpush1.msra.mxu0 0.0
        %442 = vmatprep.subr.mxu0 0.0
        %443 = vmatpush1.msra.mxu0 0.0
        %444 = vmatprep.subr.mxu0 0.0
        %445 = vmatpush1.msra.mxu0 0.0
        %446 = vmatprep.subr.mxu0 0.0
        %447 = vmatpush1.msra.mxu0 0.0
        %448 = vmatprep.subr.mxu0 0.0
        %449 = vmatpush1.msra.mxu0 0.0
        %450 = vmatprep.subr.mxu0 0.0
        %451 = vmatpush1.msra.mxu0 0.0
        %452 = vmatprep.subr.mxu0 0.0
        %453 = vmatpush1.msra.mxu0 0.0
        %454 = vmatprep.subr.mxu0 0.0
        %455 = vmatpush1.msra.mxu0 0.0
        %456 = vmatprep.subr.mxu0 0.0
        %457 = vmatpush1.msra.mxu0 0.0
        %458 = vmatprep.subr.mxu0 0.0
        %459 = vmatpush1.msra.mxu0 0.0
        %460 = vmatprep.subr.mxu0 0.0
        %461 = vmatpush1.msra.mxu0 0.0
        %462 = vmatprep.mubr.f32.mxu0 0.0
        %463 = vmatmul.mubr.f32.gmra.mrb[0].mxu0 %v383
        %v464 = vpop.f32.mrb[0].mxu0
        %v465 = vadd.f32 0.0, %v464
        %v466 = vpop.f32.mrb[0].mxu0
        %467 = vmatprep.mubr.f32.mxu0 0.0
        %468 = vmatmul.mubr.f32.gmra.mrb[0].mxu0 %v386
        %v469 = vpop.f32.mrb[0].mxu0
        %v470 = vadd.f32 0.0, %v469
        %v471 = vpop.f32.mrb[0].mxu0
        %472 = vmatprep.mubr.f32.mxu0 0.0
        %473 = vmatmul.mubr.f32.gmra.mrb[0].mxu0 %v389
        %v474 = vpop.f32.mrb[0].mxu0
        %v475 = vadd.f32 0.0, %v474
        %v476 = vpop.f32.mrb[0].mxu0
        %477 = vmatprep.mubr.f32.mxu0 0.0
        %478 = vmatmul.mubr.f32.gmra.mrb[0].mxu0 %v392
        %v479 = vpop.f32.mrb[0].mxu0
        %v480 = vadd.f32 0.0, %v479
        %v481 = vpop.f32.mrb[0].mxu0
        %482 = vdwg.mxu0
        %487 = vrot.lane.b32.xlu0 %v465, 127
        %v488 = vpop.permute.xlu0 %487
        %489 = vrot.lane.b32.xlu0 %v470, 127
        %v490 = vpop.permute.xlu0 %489
        %491 = vrot.lane.b32.xlu0 %v475, 127
        %v492 = vpop.permute.xlu0 %491
        %493 = vrot.lane.b32.xlu0 %v480, 127
        %v494 = vpop.permute.xlu0 %493
        %v499 = vadd.f32 %v465, %v488
        %v500 = vadd.f32 %v470, %v490
        %v501 = vadd.f32 %v475, %v492
        %v502 = vadd.f32 %v480, %v494
        %v503 = vxor.u32 %v499, 2147483648
        %v504 = vxor.u32 %v500, 2147483648
        %v505 = vxor.u32 %v501, 2147483648
        %v506 = vxor.u32 %v502, 2147483648
        %v507 = vmul.f32 %v503, 1.442695
        %v508 = vpow.pop %v507
        %v509 = vmul.f32 %v504, 1.442695
        %v510 = vpow.pop %v509
        %v511 = vmul.f32 %v505, 1.442695
        %v512 = vpow.pop %v511
        %v513 = vmul.f32 %v506, 1.442695
        %v514 = vpow.pop %v513
        %v515 = vadd.f32 %v508, 1.0
        %v516 = vadd.f32 %v510, 1.0
        %v517 = vadd.f32 %v512, 1.0
        %v518 = vadd.f32 %v514, 1.0
        %v519 = vrcp.pop %v515
        %v520 = vmul.f32 1.0, %v519
        %v521 = vrcp.pop %v516
        %v522 = vmul.f32 1.0, %v521
        %v523 = vrcp.pop %v517
        %v524 = vmul.f32 1.0, %v523
        %v525 = vrcp.pop %v518
        %v526 = vmul.f32 1.0, %v525
        %528 = vset.pattern.permute.xlu0 0
        %529 = vperm.xlu0 %528, %v520
        %v530 = vpop.permute.xlu0 %529
        %533 = vset.pattern.permute.xlu0 0
        %534 = vperm.xlu0 %533, %v522
        %v535 = vpop.permute.xlu0 %534
        %538 = vset.pattern.permute.xlu0 0
        %539 = vperm.xlu0 %538, %v524
        %v540 = vpop.permute.xlu0 %539
        %543 = vset.pattern.permute.xlu0 0
        %544 = vperm.xlu0 %543, %v526
        %v545 = vpop.permute.xlu0 %544
        %v547 = vmul.f32 %v259, %v530
        %v548 = vmul.f32 %v260, %v530
        %v549 = vmul.f32 %v261, %v535
        %v550 = vmul.f32 %v262, %v535
        %v551 = vmul.f32 %v263, %v540
        %v552 = vmul.f32 %v264, %v540
        %v553 = vmul.f32 %v265, %v545
        %v554 = vmul.f32 %v266, %v545
        %v555 = vadd.f32 %v547, %v549
        %v556 = vadd.f32 %v555, %v551
        %v557 = vadd.f32 %v556, %v553
        %v558 = vrot.slane %v557, 4
        %v559 = vadd.f32 %v557, %v558
        %v560 = vrot.slane %v559, 2
        %v561 = vadd.f32 %v559, %v560
        %v562 = vrot.slane %v561, 1
        %v563 = vadd.f32 %v561, %v562
        %v564 = vadd.f32 %v548, %v550
        %v565 = vadd.f32 %v564, %v552
        %v566 = vadd.f32 %v565, %v554
        %v567 = vrot.slane %v566, 4
        %v568 = vadd.f32 %v566, %v567
        %v569 = vrot.slane %v568, 2
        %v570 = vadd.f32 %v568, %v569
        %v571 = vrot.slane %v570, 1
        %v572 = vadd.f32 %v570, %v571
        %v573 = vrcp.pop 32.0
        %v574 = vmul.f32 %v563, %v573
        %v575 = vmul.f32 %v572, %v573
        %v576 = vmax.f32 %v547, %v551
        %v577 = vmax.f32 %v549, %v553
        %v578 = vmax.f32 %v576, %v577
        %v579 = vrot.slane %v578, 4
        %v580 = vmax.f32 %v578, %v579
        %v581 = vrot.slane %v580, 2
        %v582 = vmax.f32 %v580, %v581
        %v583 = vrot.slane %v582, 1
        %v584 = vmax.f32 %v582, %v583
        %v585 = vmax.f32 %v548, %v552
        %v586 = vmax.f32 %v550, %v554
        %v587 = vmax.f32 %v585, %v586
        %v588 = vrot.slane %v587, 4
        %v589 = vmax.f32 %v587, %v588
        %v590 = vrot.slane %v589, 2
        %v591 = vmax.f32 %v589, %v590
        %v592 = vrot.slane %v591, 1
        %v593 = vmax.f32 %v591, %v592
        %v594 = vld [vmem:[#allocation6] sm:$0xff]
        %v595 = vld [vmem:[#allocation6 + $0x8] sm:$0xff]
        %v596 = vld [vmem:[#allocation6 + $0x10] sm:$0xff]
        %v597 = vld [vmem:[#allocation6 + $0x18] sm:$0xff]
        %v598 = vld [vmem:[#allocation6 + $0x20] sm:$0xff]
        %v599 = vld [vmem:[#allocation6 + $0x28] sm:$0xff]
        %v600 = vld [vmem:[#allocation6 + $0x30] sm:$0xff]
        %v601 = vld [vmem:[#allocation6 + $0x38] sm:$0xff]
        %v602 = vld [vmem:[#allocation6 + $0x40] sm:$0xff]
        %v603 = vld [vmem:[#allocation6 + $0x48] sm:$0xff]
        %v604 = vld [vmem:[#allocation6 + $0x50] sm:$0xff]
        %v605 = vld [vmem:[#allocation6 + $0x58] sm:$0xff]
        %v606 = vld [vmem:[#allocation6 + $0x60] sm:$0xff]
        %v607 = vld [vmem:[#allocation6 + $0x68] sm:$0xff]
        %v608 = vld [vmem:[#allocation6 + $0x70] sm:$0xff]
        %v609 = vld [vmem:[#allocation6 + $0x78] sm:$0xff]
        %v610 = vld [vmem:[#allocation6 + $0x80] sm:$0xff]
        %v611 = vld [vmem:[#allocation6 + $0x88] sm:$0xff]
        %v612 = vld [vmem:[#allocation6 + $0x90] sm:$0xff]
        %v613 = vld [vmem:[#allocation6 + $0x98] sm:$0xff]
        %v614 = vld [vmem:[#allocation6 + $0xa0] sm:$0xff]
        %v615 = vld [vmem:[#allocation6 + $0xa8] sm:$0xff]
        %v616 = vld [vmem:[#allocation6 + $0xb0] sm:$0xff]
        %v617 = vld [vmem:[#allocation6 + $0xb8] sm:$0xff]
        %v618 = vld [vmem:[#allocation6 + $0xc0] sm:$0xff]
        %v619 = vld [vmem:[#allocation6 + $0xc8] sm:$0xff]
        %v620 = vld [vmem:[#allocation6 + $0xd0] sm:$0xff]
        %v621 = vld [vmem:[#allocation6 + $0xd8] sm:$0xff]
        %v622 = vld [vmem:[#allocation6 + $0xe0] sm:$0xff]
        %v623 = vld [vmem:[#allocation6 + $0xe8] sm:$0xff]
        %v624 = vld [vmem:[#allocation6 + $0xf0] sm:$0xff]
        %v625 = vld [vmem:[#allocation6 + $0xf8] sm:$0xff]
        %v626 = vld [vmem:[#allocation6 + $0x100] sm:$0xff]
        %v627 = vld [vmem:[#allocation6 + $0x108] sm:$0xff]
        %v628 = vld [vmem:[#allocation6 + $0x110] sm:$0xff]
        %v629 = vld [vmem:[#allocation6 + $0x118] sm:$0xff]
        %v630 = vld [vmem:[#allocation6 + $0x120] sm:$0xff]
        %v631 = vld [vmem:[#allocation6 + $0x128] sm:$0xff]
        %v632 = vld [vmem:[#allocation6 + $0x130] sm:$0xff]
        %v633 = vld [vmem:[#allocation6 + $0x138] sm:$0xff]
        %v634 = vld [vmem:[#allocation6 + $0x140] sm:$0xff]
        %v635 = vld [vmem:[#allocation6 + $0x148] sm:$0xff]
        %v636 = vld [vmem:[#allocation6 + $0x150] sm:$0xff]
        %v637 = vld [vmem:[#allocation6 + $0x158] sm:$0xff]
        %v638 = vld [vmem:[#allocation6 + $0x160] sm:$0xff]
        %v639 = vld [vmem:[#allocation6 + $0x168] sm:$0xff]
        %v640 = vld [vmem:[#allocation6 + $0x170] sm:$0xff]
        %v641 = vld [vmem:[#allocation6 + $0x178] sm:$0xff]
        %v642 = vld [vmem:[#allocation6 + $0x180] sm:$0xff]
        %v643 = vld [vmem:[#allocation6 + $0x188] sm:$0xff]
        %v644 = vld [vmem:[#allocation6 + $0x190] sm:$0xff]
        %v645 = vld [vmem:[#allocation6 + $0x198] sm:$0xff]
        %v646 = vld [vmem:[#allocation6 + $0x1a0] sm:$0xff]
        %v647 = vld [vmem:[#allocation6 + $0x1a8] sm:$0xff]
        %v648 = vld [vmem:[#allocation6 + $0x1b0] sm:$0xff]
        %v649 = vld [vmem:[#allocation6 + $0x1b8] sm:$0xff]
        %v650 = vld [vmem:[#allocation6 + $0x1c0] sm:$0xff]
        %v651 = vld [vmem:[#allocation6 + $0x1c8] sm:$0xff]
        %v652 = vld [vmem:[#allocation6 + $0x1d0] sm:$0xff]
        %v653 = vld [vmem:[#allocation6 + $0x1d8] sm:$0xff]
        %v654 = vld [vmem:[#allocation6 + $0x1e0] sm:$0xff]
        %v655 = vld [vmem:[#allocation6 + $0x1e8] sm:$0xff]
        %v656 = vld [vmem:[#allocation6 + $0x1f0] sm:$0xff]
        %v657 = vld [vmem:[#allocation6 + $0x1f8] sm:$0xff]
        %v658 = vld [vmem:[#allocation6 + $0x200] sm:$0xff]
        %v659 = vld [vmem:[#allocation6 + $0x208] sm:$0xff]
        %v660 = vld [vmem:[#allocation6 + $0x210] sm:$0xff]
        %v661 = vld [vmem:[#allocation6 + $0x218] sm:$0xff]
        %v662 = vld [vmem:[#allocation6 + $0x220] sm:$0xff]
        %v663 = vld [vmem:[#allocation6 + $0x228] sm:$0xff]
        %v664 = vld [vmem:[#allocation6 + $0x230] sm:$0xff]
        %v665 = vld [vmem:[#allocation6 + $0x238] sm:$0xff]
        %v666 = vld [vmem:[#allocation6 + $0x240] sm:$0xff]
        %v667 = vld [vmem:[#allocation6 + $0x248] sm:$0xff]
        %v668 = vld [vmem:[#allocation6 + $0x250] sm:$0xff]
        %v669 = vld [vmem:[#allocation6 + $0x258] sm:$0xff]
        %v670 = vld [vmem:[#allocation6 + $0x260] sm:$0xff]
        %v671 = vld [vmem:[#allocation6 + $0x268] sm:$0xff]
        %v672 = vld [vmem:[#allocation6 + $0x270] sm:$0xff]
        %v673 = vld [vmem:[#allocation6 + $0x278] sm:$0xff]
        %v674 = vld [vmem:[#allocation6 + $0x280] sm:$0xff]
        %v675 = vld [vmem:[#allocation6 + $0x288] sm:$0xff]
        %v676 = vld [vmem:[#allocation6 + $0x290] sm:$0xff]
        %v677 = vld [vmem:[#allocation6 + $0x298] sm:$0xff]
        %v678 = vld [vmem:[#allocation6 + $0x2a0] sm:$0xff]
        %v679 = vld [vmem:[#allocation6 + $0x2a8] sm:$0xff]
        %v680 = vld [vmem:[#allocation6 + $0x2b0] sm:$0xff]
        %v681 = vld [vmem:[#allocation6 + $0x2b8] sm:$0xff]
        %v682 = vld [vmem:[#allocation6 + $0x2c0] sm:$0xff]
        %v683 = vld [vmem:[#allocation6 + $0x2c8] sm:$0xff]
        %v684 = vld [vmem:[#allocation6 + $0x2d0] sm:$0xff]
        %v685 = vld [vmem:[#allocation6 + $0x2d8] sm:$0xff]
        %v686 = vld [vmem:[#allocation6 + $0x2e0] sm:$0xff]
        %v687 = vld [vmem:[#allocation6 + $0x2e8] sm:$0xff]
        %v688 = vld [vmem:[#allocation6 + $0x2f0] sm:$0xff]
        %v689 = vld [vmem:[#allocation6 + $0x2f8] sm:$0xff]
        %v690 = vld [vmem:[#allocation6 + $0x300] sm:$0xff]
        %v691 = vld [vmem:[#allocation6 + $0x308] sm:$0xff]
        %v692 = vld [vmem:[#allocation6 + $0x310] sm:$0xff]
        %v693 = vld [vmem:[#allocation6 + $0x318] sm:$0xff]
        %v694 = vld [vmem:[#allocation6 + $0x320] sm:$0xff]
        %v695 = vld [vmem:[#allocation6 + $0x328] sm:$0xff]
        %v696 = vld [vmem:[#allocation6 + $0x330] sm:$0xff]
        %v697 = vld [vmem:[#allocation6 + $0x338] sm:$0xff]
        %v698 = vld [vmem:[#allocation6 + $0x340] sm:$0xff]
        %v699 = vld [vmem:[#allocation6 + $0x348] sm:$0xff]
        %v700 = vld [vmem:[#allocation6 + $0x350] sm:$0xff]
        %v701 = vld [vmem:[#allocation6 + $0x358] sm:$0xff]
        %v702 = vld [vmem:[#allocation6 + $0x360] sm:$0xff]
        %v703 = vld [vmem:[#allocation6 + $0x368] sm:$0xff]
        %v704 = vld [vmem:[#allocation6 + $0x370] sm:$0xff]
        %v705 = vld [vmem:[#allocation6 + $0x378] sm:$0xff]
        %v706 = vld [vmem:[#allocation6 + $0x380] sm:$0xff]
        %v707 = vld [vmem:[#allocation6 + $0x388] sm:$0xff]
        %v708 = vld [vmem:[#allocation6 + $0x390] sm:$0xff]
        %v709 = vld [vmem:[#allocation6 + $0x398] sm:$0xff]
        %v710 = vld [vmem:[#allocation6 + $0x3a0] sm:$0xff]
        %v711 = vld [vmem:[#allocation6 + $0x3a8] sm:$0xff]
        %v712 = vld [vmem:[#allocation6 + $0x3b0] sm:$0xff]
        %v713 = vld [vmem:[#allocation6 + $0x3b8] sm:$0xff]
        %v714 = vld [vmem:[#allocation6 + $0x3c0] sm:$0xff]
        %v715 = vld [vmem:[#allocation6 + $0x3c8] sm:$0xff]
        %v716 = vld [vmem:[#allocation6 + $0x3d0] sm:$0xff]
        %v717 = vld [vmem:[#allocation6 + $0x3d8] sm:$0xff]
        %v718 = vld [vmem:[#allocation6 + $0x3e0] sm:$0xff]
        %v719 = vld [vmem:[#allocation6 + $0x3e8] sm:$0xff]
        %v720 = vld [vmem:[#allocation6 + $0x3f0] sm:$0xff]
        %v721 = vld [vmem:[#allocation6 + $0x3f8] sm:$0xff]
        %s722 = sld [smem:[#allocation2]]
        %v723 = vstv %s722
        %724 = vmatprep.subr.mxu0 %v595
        %725 = vmatpush1.msra.mxu0 %v594
        %726 = vmatprep.subr.mxu0 %v597
        %727 = vmatpush1.msra.mxu0 %v596
        %728 = vmatprep.subr.mxu0 %v599
        %729 = vmatpush1.msra.mxu0 %v598
        %730 = vmatprep.subr.mxu0 %v601
        %731 = vmatpush1.msra.mxu0 %v600
        %732 = vmatprep.subr.mxu0 %v603
        %733 = vmatpush1.msra.mxu0 %v602
        %734 = vmatprep.subr.mxu0 %v605
        %735 = vmatpush1.msra.mxu0 %v604
        %736 = vmatprep.subr.mxu0 %v607
        %737 = vmatpush1.msra.mxu0 %v606
        %738 = vmatprep.subr.mxu0 %v609
        %739 = vmatpush1.msra.mxu0 %v608
        %740 = vmatprep.subr.mxu0 %v611
        %741 = vmatpush1.msra.mxu0 %v610
        %742 = vmatprep.subr.mxu0 %v613
        %743 = vmatpush1.msra.mxu0 %v612
        %744 = vmatprep.subr.mxu0 %v615
        %745 = vmatpush1.msra.mxu0 %v614
        %746 = vmatprep.subr.mxu0 %v617
        %747 = vmatpush1.msra.mxu0 %v616
        %748 = vmatprep.subr.mxu0 %v619
        %749 = vmatpush1.msra.mxu0 %v618
        %750 = vmatprep.subr.mxu0 %v621
        %751 = vmatpush1.msra.mxu0 %v620
        %752 = vmatprep.subr.mxu0 %v623
        %753 = vmatpush1.msra.mxu0 %v622
        %754 = vmatprep.subr.mxu0 %v625
        %755 = vmatpush1.msra.mxu0 %v624
        %756 = vmatprep.subr.mxu0 %v627
        %757 = vmatpush1.msra.mxu0 %v626
        %758 = vmatprep.subr.mxu0 %v629
        %759 = vmatpush1.msra.mxu0 %v628
        %760 = vmatprep.subr.mxu0 %v631
        %761 = vmatpush1.msra.mxu0 %v630
        %762 = vmatprep.subr.mxu0 %v633
        %763 = vmatpush1.msra.mxu0 %v632
        %764 = vmatprep.subr.mxu0 %v635
        %765 = vmatpush1.msra.mxu0 %v634
        %766 = vmatprep.subr.mxu0 %v637
        %767 = vmatpush1.msra.mxu0 %v636
        %768 = vmatprep.subr.mxu0 %v639
        %769 = vmatpush1.msra.mxu0 %v638
        %770 = vmatprep.subr.mxu0 %v641
        %771 = vmatpush1.msra.mxu0 %v640
        %772 = vmatprep.subr.mxu0 %v643
        %773 = vmatpush1.msra.mxu0 %v642
        %774 = vmatprep.subr.mxu0 %v645
        %775 = vmatpush1.msra.mxu0 %v644
        %776 = vmatprep.subr.mxu0 %v647
        %777 = vmatpush1.msra.mxu0 %v646
        %778 = vmatprep.subr.mxu0 %v649
        %779 = vmatpush1.msra.mxu0 %v648
        %780 = vmatprep.subr.mxu0 %v651
        %781 = vmatpush1.msra.mxu0 %v650
        %782 = vmatprep.subr.mxu0 %v653
        %783 = vmatpush1.msra.mxu0 %v652
        %784 = vmatprep.subr.mxu0 %v655
        %785 = vmatpush1.msra.mxu0 %v654
        %786 = vmatprep.subr.mxu0 %v657
        %787 = vmatpush1.msra.mxu0 %v656
        %788 = vmatprep.mubr.f32.mxu0 %v575
        %789 = vmatmul.mubr.f32.gmra.mrb[0].mxu0 %v574
        %v790 = vpop.f32.mrb[0].mxu0
        %v791 = vadd.f32 %v723, %v790
        %v792 = vpop.f32.mrb[0].mxu0
        %v793 = vadd.f32 %v723, %v792
        %794 = vdwg.mxu0
        %795 = vmatprep.subr.mxu0 %v659
        %796 = vmatpush1.msra.mxu0 %v658
        %797 = vmatprep.subr.mxu0 %v661
        %798 = vmatpush1.msra.mxu0 %v660
        %799 = vmatprep.subr.mxu0 %v663
        %800 = vmatpush1.msra.mxu0 %v662
        %801 = vmatprep.subr.mxu0 %v665
        %802 = vmatpush1.msra.mxu0 %v664
        %803 = vmatprep.subr.mxu0 %v667
        %804 = vmatpush1.msra.mxu0 %v666
        %805 = vmatprep.subr.mxu0 %v669
        %806 = vmatpush1.msra.mxu0 %v668
        %807 = vmatprep.subr.mxu0 %v671
        %808 = vmatpush1.msra.mxu0 %v670
        %809 = vmatprep.subr.mxu0 %v673
        %810 = vmatpush1.msra.mxu0 %v672
        %811 = vmatprep.subr.mxu0 %v675
        %812 = vmatpush1.msra.mxu0 %v674
        %813 = vmatprep.subr.mxu0 %v677
        %814 = vmatpush1.msra.mxu0 %v676
        %815 = vmatprep.subr.mxu0 %v679
        %816 = vmatpush1.msra.mxu0 %v678
        %817 = vmatprep.subr.mxu0 %v681
        %818 = vmatpush1.msra.mxu0 %v680
        %819 = vmatprep.subr.mxu0 %v683
        %820 = vmatpush1.msra.mxu0 %v682
        %821 = vmatprep.subr.mxu0 %v685
        %822 = vmatpush1.msra.mxu0 %v684
        %823 = vmatprep.subr.mxu0 %v687
        %824 = vmatpush1.msra.mxu0 %v686
        %825 = vmatprep.subr.mxu0 %v689
        %826 = vmatpush1.msra.mxu0 %v688
        %827 = vmatprep.subr.mxu0 %v691
        %828 = vmatpush1.msra.mxu0 %v690
        %829 = vmatprep.subr.mxu0 %v693
        %830 = vmatpush1.msra.mxu0 %v692
        %831 = vmatprep.subr.mxu0 %v695
        %832 = vmatpush1.msra.mxu0 %v694
        %833 = vmatprep.subr.mxu0 %v697
        %834 = vmatpush1.msra.mxu0 %v696
        %835 = vmatprep.subr.mxu0 %v699
        %836 = vmatpush1.msra.mxu0 %v698
        %837 = vmatprep.subr.mxu0 %v701
        %838 = vmatpush1.msra.mxu0 %v700
        %839 = vmatprep.subr.mxu0 %v703
        %840 = vmatpush1.msra.mxu0 %v702
        %841 = vmatprep.subr.mxu0 %v705
        %842 = vmatpush1.msra.mxu0 %v704
        %843 = vmatprep.subr.mxu0 %v707
        %844 = vmatpush1.msra.mxu0 %v706
        %845 = vmatprep.subr.mxu0 %v709
        %846 = vmatpush1.msra.mxu0 %v708
        %847 = vmatprep.subr.mxu0 %v711
        %848 = vmatpush1.msra.mxu0 %v710
        %849 = vmatprep.subr.mxu0 %v713
        %850 = vmatpush1.msra.mxu0 %v712
        %851 = vmatprep.subr.mxu0 %v715
        %852 = vmatpush1.msra.mxu0 %v714
        %853 = vmatprep.subr.mxu0 %v717
        %854 = vmatpush1.msra.mxu0 %v716
        %855 = vmatprep.subr.mxu0 %v719
        %856 = vmatpush1.msra.mxu0 %v718
        %857 = vmatprep.subr.mxu0 %v721
        %858 = vmatpush1.msra.mxu0 %v720
        %859 = vmatprep.mubr.f32.mxu0 %v593
        %860 = vmatmul.mubr.f32.gmra.mrb[0].mxu0 %v584
        %v861 = vpop.f32.mrb[0].mxu0
        %v862 = vadd.f32 %v791, %v861
        %v863 = vpop.f32.mrb[0].mxu0
        %v864 = vadd.f32 %v793, %v863
        %865 = vdwg.mxu0
        %v866 = vxor.u32 %v862, 2147483648
        %v867 = vxor.u32 %v864, 2147483648
        %v868 = vmul.f32 %v866, 1.442695
        %v869 = vpow.pop %v868
        %v870 = vmul.f32 %v867, 1.442695
        %v871 = vpow.pop %v870
        %v872 = vadd.f32 %v869, 1.0
        %v873 = vadd.f32 %v871, 1.0
        %v874 = vrcp.pop %v872
        %v875 = vmul.f32 1.0, %v874
        %v876 = vrcp.pop %v873
        %v877 = vmul.f32 1.0, %v876
        %v878 = vlaneseq
        %v879 = vshrl.u32 %v878, 7
        %v880 = vsub.s32 0, %v879
        %v881 = vrot.slane %v875, %v880
        %v882 = vlaneseq
        %v883 = vshrl.u32 %v882, 7
        %v884 = vsub.s32 0, %v883
        %v885 = vrot.slane %v877, %v884
        %v886 = vmul.f32 %v547, %v881
        %v887 = vmul.f32 %v548, %v885
        %v888 = vmul.f32 %v549, %v881
        %v889 = vmul.f32 %v550, %v885
        %v890 = vmul.f32 %v551, %v881
        %v891 = vmul.f32 %v552, %v885
        %v892 = vmul.f32 %v553, %v881
        %v893 = vmul.f32 %v554, %v885
        %894 = vst [vmem:[%s258] sm:$0xff] %v886
        %895 = vst [vmem:[%s258 + $0x8] sm:$0xff] %v887
        %896 = vst [vmem:[%s258 + $0x10] sm:$0xff] %v888
        %897 = vst [vmem:[%s258 + $0x18] sm:$0xff] %v889
        %898 = vst [vmem:[%s258 + $0x20] sm:$0xff] %v890
        %899 = vst [vmem:[%s258 + $0x28] sm:$0xff] %v891
        %900 = vst [vmem:[%s258 + $0x30] sm:$0xff] %v892
        %901 = vst [vmem:[%s258 + $0x38] sm:$0xff] %v893
        %s902 = sand.u32 %s142, 1
        %s903 = scalar_lea.sflag [#allocation5], %s902
        %s904 = sand.u32 %s142, 1
        %s905 = smul.addr %s904, 64
        %s906 = scalar_lea.vmem [#allocation8], %s905
        // Predicated region
        $region49: #{tpu_custom_call.1} parent=39 // pred_check
          %p907 = pneg %p152
        $region50: #{tpu_custom_call.1} parent=39 // pred_check_branch
          %909 = sbr.rel (%p907) target = $region52
        $region51: #{tpu_custom_call.1} parent=39 // pred_region
          %s911 = ssub.s32 1024, 1024
          %912 = vsyncadd %s903, %s911
          %s913 = smul.addr %s24, 8
          %s914 = smul.addr %s913, 128
          %s915 = scalar_lea.hbm %s5, %s914
          %s916 = sshll.u32 %s906, 4
          %s917 = int_to_ptr.vmem [resolvable:$true] %s916
          %922 = dma.vmem_to_hbm [thread:$0]  %s917, 1024, %s915, %s903, 256, 256, 16
        $region52: #{tpu_custom_call.1} parent=39 // pred_fallthru
          _
      $region40: #{tpu_custom_call.1} parent=5 // pred_fallthru
        _
      %p923 = scmp.le.s32.totalorder 2, %s19
      // Predicated region
      $region53: #{tpu_custom_call.1} parent=5 // pred_check
        %p924 = pneg %p923
      $region54: #{tpu_custom_call.1} parent=5 // pred_check_branch
        %926 = sbr.rel (%p924) target = $region56
      $region55: #{tpu_custom_call.1} parent=5 // pred_region
        %s927 = ssub.s32 %s19, 2
        // Predicated region
        $region57: #{tpu_custom_call.1} parent=55 // pred_check
          %p928 = pneg %p158
        $region58: #{tpu_custom_call.1} parent=55 // pred_check_branch
          %930 = sbr.rel (%p928) target = $region60
        $region59: #{tpu_custom_call.1} parent=55 // pred_region
          %s931 = sand.u32 %s143, 1
          %s932 = scalar_lea.sflag [#allocation5], %s931
          %s933 = sand.u32 %s143, 1
          %s934 = smul.addr %s933, 64
          %s935 = scalar_lea.vmem [#allocation8], %s934
          %936 = dma.done %s932, 1024
        $region60: #{tpu_custom_call.1} parent=55 // pred_fallthru
          _
      $region56: #{tpu_custom_call.1} parent=5 // pred_fallthru
        _
    $region6: #{tpu_custom_call.1} parent=1 // loop_footer
      %s23 = sadd.s32 1, %s19
    $region7: #{tpu_custom_call.1} parent=1 // loop_footer_branch
      %18 = sbr.rel target = $region3
    $region8: #{tpu_custom_call.1} parent=1 // loop_exit
      _
    %937 = vsyncpa [#allocation4], 1
    %s938 = scalar_lea.sflag [#allocation4], 1
    %939 = vsyncpa %s938, 1
    %940 = vsyncpa [#allocation7], 1
    %941 = vsyncpa [#allocation5], 1
    %s942 = scalar_lea.sflag [#allocation5], 1
    %943 = vsyncpa %s942, 1

</llo_original>
